<compile_context>
chip_gen: v5e
topology: v5e:2x2
jax: 0.10.0
libtpu: 0.0.40
codegen_flags: <defaults>
</compile_context>

<pallas_src>
import jax
import jax.numpy as jnp
from jax import lax
from jax.experimental import pallas as pl
from jax.experimental.pallas import tpu as pltpu

# Synthetic "EnvironmentBatcher" category counts (deterministic, in-script).
PROPERTY_COUNTS = {
    "prop_types": 5,
    "hut_colors": 4,
    "hut_rotations": 4,
    "tree_types": 3,
    "plant_types": 3,
    "windmill_rotations": 4,
    "tower_rotations": 4,
    "tent_rotations": 4,
    "terrain": 6,
}
PROPERTY_NAMES = list(PROPERTY_COUNTS.keys())
NUM_PROPS = len(PROPERTY_NAMES)                 # 9 (last one is terrain)
NUM_EMBEDDINGS = sum(PROPERTY_COUNTS.values())  # 37

BAND = 8                      # per-property strip width (sublane-aligned)
K = NUM_PROPS * BAND          # 72 one-hot rows total
# Redirect target (BAND-1) must be a padding column in every band.
assert max(PROPERTY_COUNTS.values()) < BAND


def _round_up(x, m):
    return (x + m - 1) // m * m


def _kernel(idx_ref, lhs_ref, out_ref):
    # idx_ref : (1, 9, TS) int32 -- per-property LOCAL indices in [0, BAND)
    #                               (masked-out properties already point at a
    #                                zero column of the LHS)
    # lhs_ref : (C, K)     f32   -- block-diagonal remapped embedding table
    # out_ref : (1, C, TS) f32   -- C = 2*E_pad if hierarchical else E_pad
    ts = idx_ref.shape[2]

    # Hoisted once per grid step; reused for every band.
    band_ids = lax.broadcasted_iota(jnp.int32, (BAND, ts), 0)

    # Strip one-hot: each property's 8-row band is written exactly once
    # (no accumulate-into-multihot read-modify-write passes).
    bands = []
    for p in range(NUM_PROPS):
        eq = band_ids == idx_ref[0, p:p + 1, :]            # (BAND, TS)
        bands.append(eq.astype(jnp.float32))
    one_hot = jnp.concatenate(bands, axis=0)               # (K, TS)

    # Single MXU pass produces the full (C, TS) block; single unmasked,
    # lane-dense store.
    out_ref[0, :, :] = jnp.dot(lhs_ref[...], one_hot,
                               preferred_element_type=jnp.float32)


def static_embedder_forward(property_maps, nonempty_mask, table,
                            hierarchical=True, zero_out=True, tile_s=None):
    """property_maps: dict name -> (B, H, W) int32 raw category indices.
    nonempty_mask: (B, 8, H, W) float32 boolean-valued mask (ignored if not
    zero_out). table: (NUM_EMBEDDINGS, E) float32.
    Returns (B, 2E, H, W) if hierarchical else (B, E, H, W)  (NCHW)."""
    B, H, W = property_maps[PROPERTY_NAMES[0]].shape
    S = H * W
    E = table.shape[1]
    E_pad = _round_up(E, 8)
    C = 2 * E_pad if hierarchical else E_pad

    # --- per-property local indices in [0, BAND), mask folded into indices ---
    # Masked-out non-terrain properties are redirected to local index BAND-1,
    # whose LHS column is zero -> exact for the boolean PyTorch mask.
    cols = []
    for p, name in enumerate(PROPERTY_NAMES):
        li = property_maps[name].reshape(B, S).astype(jnp.int32)
        if zero_out and p < NUM_PROPS - 1:
            m = nonempty_mask[:, p].reshape(B, S)
            li = jnp.where(m > 0, li, BAND - 1)
        cols.append(li)
    idx = jnp.stack(cols, axis=1)                          # (B, 9, S)

    # --- block-diagonal remapped LHS (C, K) -----------------------------------
    # Band p occupies columns [p*BAND, p*BAND + count_p); spare columns are zero.
    # Hierarchical: non-terrain bands live in rows [0, E), terrain in
    # rows [E_pad, E_pad + E) -> prop-sum and terrain come out of ONE matmul.
    lhs = jnp.zeros((C, K), jnp.float32)
    offset = 0
    for p, name in enumerate(PROPERTY_NAMES):
        cnt = PROPERTY_COUNTS[name]
        row0 = E_pad if (hierarchical and p == NUM_PROPS - 1) else 0
        lhs = lhs.at[row0:row0 + E, p * BAND:p * BAND + cnt].set(
            table[offset:offset + cnt].T)
        offset += cnt

    # --- lane-dense spatial tiling --------------------------------------------
    # 4096 keeps (idx + out) double-buffered + one-hot temporaries well inside
    # every generation's scoped-VMEM default while amortizing per-step overhead.
    if tile_s is None:
        tile_s = min(4096, _round_up(S, 128))
    S_pad = _round_up(S, tile_s)
    if S_pad != S:
        idx = jnp.pad(idx, ((0, 0), (0, 0), (0, S_pad - S)))  # index 0 is valid;
        # padded columns are sliced off below.
    n_tiles = S_pad // tile_s

    out = pl.pallas_call(
        _kernel,
        out_shape=jax.ShapeDtypeStruct((B, C, S_pad), jnp.float32),
        grid_spec=pltpu.PrefetchScalarGridSpec(
            num_scalar_prefetch=0,
            grid=(B, n_tiles),
            in_specs=[
                pl.BlockSpec((1, NUM_PROPS, tile_s), lambda b, t: (b, 0, t)),
                pl.BlockSpec((C, K), lambda b, t: (0, 0)),
            ],
            out_specs=pl.BlockSpec((1, C, tile_s), lambda b, t: (b, 0, t)),
        ),
        compiler_params=pltpu.CompilerParams(
            dimension_semantics=("parallel", "parallel"),
            vmem_limit_bytes=32 * 1024 * 1024),
    )(idx, lhs)

    out = out[:, :, :S]
    if hierarchical:
        out = jnp.concatenate([out[:, :E], out[:, E_pad:E_pad + E]], axis=1)
    else:
        out = out[:, :E]
    return out.reshape(B, -1, H, W)


def reference_forward(property_maps, nonempty_mask, table,
                      hierarchical=True, zero_out=True):
    """Pure-JAX reference mirroring the PyTorch forward exactly."""
    offset = 0
    shifted = []
    for name in PROPERTY_NAMES:
        shifted.append(property_maps[name].astype(jnp.int32) + offset)
        offset += PROPERTY_COUNTS[name]
    stacked = jnp.stack(shifted, axis=0)          # (9, B, H, W)
    emb = table[stacked]                          # (9, B, H, W, E)
    emb = jnp.transpose(emb, (1, 0, 4, 2, 3))     # (B, 9, E, H, W)
    if zero_out:
        m = nonempty_mask[:, :, None, :, :]       # (B, 8, 1, H, W)
        emb = emb.at[:, :-1].multiply(m)
    if hierarchical:
        prop_emb = emb[:, :-1].sum(axis=1)        # (B, E, H, W)
        terrain_emb = emb[:, -1]                  # (B, E, H, W)
        return jnp.concatenate([prop_emb, terrain_emb], axis=1)
    return emb.sum(axis=1)


if __name__ == "__main__":
    B, H, W = 2, 8, 8
    E = 32

    key = jax.random.PRNGKey(0)
    key, tkey = jax.random.split(key)
    # Xavier-normal init (matches nn.init.xavier_normal_ for (N, E) weight).
    xavier_std = (2.0 / (NUM_EMBEDDINGS + E)) ** 0.5
    table = xavier_std * jax.random.normal(tkey, (NUM_EMBEDDINGS, E), jnp.float32)

    property_maps = {}
    for name in PROPERTY_NAMES:
        key, sub = jax.random.split(key)
        property_maps[name] = jax.random.randint(
            sub, (B, H, W), 0, PROPERTY_COUNTS[name], dtype=jnp.int32)

    key, mkey = jax.random.split(key)
    nonempty_mask = jax.random.bernoulli(
        mkey, 0.7, (B, NUM_PROPS - 1, H, W)).astype(jnp.float32)

    # Primary config (hierarchical + zero-out), as in the module's default use.
    out = static_embedder_forward(property_maps, nonempty_mask, table,
                                  hierarchical=True, zero_out=True)
    out = jax.block_until_ready(out)
    ref = reference_forward(property_maps, nonempty_mask, table,
                            hierarchical=True, zero_out=True)
    assert out.shape == (B, 2 * E, H, W)
    assert jnp.allclose(out, ref, atol=1e-5, rtol=1e-5), "hierarchical mismatch"

    # Non-hierarchical exercises the single-band-row-range (flat) LHS.
    out2 = static_embedder_forward(property_maps, nonempty_mask, table,
                                   hierarchical=False, zero_out=True)
    out2 = jax.block_until_ready(out2)
    ref2 = reference_forward(property_maps, nonempty_mask, table,
                             hierarchical=False, zero_out=True)
    assert out2.shape == (B, E, H, W)
    assert jnp.allclose(out2, ref2, atol=1e-5, rtol=1e-5), "flat mismatch"

    # No-mask config exercises the zero_out=False path (no mask folding at all).
    out3 = static_embedder_forward(property_maps, nonempty_mask, table,
                                   hierarchical=True, zero_out=False)
    out3 = jax.block_until_ready(out3)
    ref3 = reference_forward(property_maps, nonempty_mask, table,
                             hierarchical=True, zero_out=False)
    assert jnp.allclose(out3, ref3, atol=1e-5, rtol=1e-5), "no-zero-out mismatch"

    print("KERNEL_OK")
</pallas_src>

<mosaic_0001>
module attributes {stable_mosaic.version = 11 : i64} {
  func.func @_kernel(%arg0: i32, %arg1: i32, %arg2: memref<1x9x128xi32, #tpu.memory_space<vmem>>, %arg3: memref<64x72xf32, #tpu.memory_space<vmem>>, %arg4: memref<1x64x128xf32, #tpu.memory_space<vmem>>) attributes {dimension_semantics = [#tpu.dimension_semantics<parallel>, #tpu.dimension_semantics<parallel>], iteration_bounds = array<i64: 2, 1>, scalar_prefetch = 0 : i64, scratch_operands = 0 : i64, tpu.core_type = #tpu.core_type<tc>, window_params = [{transform_indices = @transform_0, window_bounds = array<i64: 1, 9, 128>}, {pipeline_mode = #tpu.pipeline_mode<synchronous>, transform_indices = @transform_1, window_bounds = array<i64: 64, 72>}, {transform_indices = @transform_2, window_bounds = array<i64: 1, 64, 128>}]} {
    %0 = tpu.iota {dimensions = array<i32: 0>} : vector<8x128xi32>
    %c0 = arith.constant 0 : index
    %c0_0 = arith.constant 0 : index
    %c0_1 = arith.constant 0 : index
    %1 = vector.load %arg2[%c0, %c0_0, %c0_1] : memref<1x9x128xi32, #tpu.memory_space<vmem>>, vector<1x1x128xi32>
    %2 = vector.shape_cast %1 : vector<1x1x128xi32> to vector<1x128xi32>
    %3 = vector.broadcast %2 : vector<1x128xi32> to vector<8x128xi32>
    %4 = arith.cmpi eq, %0, %3 : vector<8x128xi32>
    %5 = arith.extui %4 : vector<8x128xi1> to vector<8x128xi32>
    %6 = arith.sitofp %5 : vector<8x128xi32> to vector<8x128xf32>
    %c0_2 = arith.constant 0 : index
    %c1 = arith.constant 1 : index
    %c0_3 = arith.constant 0 : index
    %7 = vector.load %arg2[%c0_2, %c1, %c0_3] : memref<1x9x128xi32, #tpu.memory_space<vmem>>, vector<1x1x128xi32>
    %8 = vector.shape_cast %7 : vector<1x1x128xi32> to vector<1x128xi32>
    %9 = vector.broadcast %8 : vector<1x128xi32> to vector<8x128xi32>
    %10 = arith.cmpi eq, %0, %9 : vector<8x128xi32>
    %11 = arith.extui %10 : vector<8x128xi1> to vector<8x128xi32>
    %12 = arith.sitofp %11 : vector<8x128xi32> to vector<8x128xf32>
    %c0_4 = arith.constant 0 : index
    %c2 = arith.constant 2 : index
    %c0_5 = arith.constant 0 : index
    %13 = vector.load %arg2[%c0_4, %c2, %c0_5] : memref<1x9x128xi32, #tpu.memory_space<vmem>>, vector<1x1x128xi32>
    %14 = vector.shape_cast %13 : vector<1x1x128xi32> to vector<1x128xi32>
    %15 = vector.broadcast %14 : vector<1x128xi32> to vector<8x128xi32>
    %16 = arith.cmpi eq, %0, %15 : vector<8x128xi32>
    %17 = arith.extui %16 : vector<8x128xi1> to vector<8x128xi32>
    %18 = arith.sitofp %17 : vector<8x128xi32> to vector<8x128xf32>
    %c0_6 = arith.constant 0 : index
    %c3 = arith.constant 3 : index
    %c0_7 = arith.constant 0 : index
    %19 = vector.load %arg2[%c0_6, %c3, %c0_7] : memref<1x9x128xi32, #tpu.memory_space<vmem>>, vector<1x1x128xi32>
    %20 = vector.shape_cast %19 : vector<1x1x128xi32> to vector<1x128xi32>
    %21 = vector.broadcast %20 : vector<1x128xi32> to vector<8x128xi32>
    %22 = arith.cmpi eq, %0, %21 : vector<8x128xi32>
    %23 = arith.extui %22 : vector<8x128xi1> to vector<8x128xi32>
    %24 = arith.sitofp %23 : vector<8x128xi32> to vector<8x128xf32>
    %c0_8 = arith.constant 0 : index
    %c4 = arith.constant 4 : index
    %c0_9 = arith.constant 0 : index
    %25 = vector.load %arg2[%c0_8, %c4, %c0_9] : memref<1x9x128xi32, #tpu.memory_space<vmem>>, vector<1x1x128xi32>
    %26 = vector.shape_cast %25 : vector<1x1x128xi32> to vector<1x128xi32>
    %27 = vector.broadcast %26 : vector<1x128xi32> to vector<8x128xi32>
    %28 = arith.cmpi eq, %0, %27 : vector<8x128xi32>
    %29 = arith.extui %28 : vector<8x128xi1> to vector<8x128xi32>
    %30 = arith.sitofp %29 : vector<8x128xi32> to vector<8x128xf32>
    %c0_10 = arith.constant 0 : index
    %c5 = arith.constant 5 : index
    %c0_11 = arith.constant 0 : index
    %31 = vector.load %arg2[%c0_10, %c5, %c0_11] : memref<1x9x128xi32, #tpu.memory_space<vmem>>, vector<1x1x128xi32>
    %32 = vector.shape_cast %31 : vector<1x1x128xi32> to vector<1x128xi32>
    %33 = vector.broadcast %32 : vector<1x128xi32> to vector<8x128xi32>
    %34 = arith.cmpi eq, %0, %33 : vector<8x128xi32>
    %35 = arith.extui %34 : vector<8x128xi1> to vector<8x128xi32>
    %36 = arith.sitofp %35 : vector<8x128xi32> to vector<8x128xf32>
    %c0_12 = arith.constant 0 : index
    %c6 = arith.constant 6 : index
    %c0_13 = arith.constant 0 : index
    %37 = vector.load %arg2[%c0_12, %c6, %c0_13] : memref<1x9x128xi32, #tpu.memory_space<vmem>>, vector<1x1x128xi32>
    %38 = vector.shape_cast %37 : vector<1x1x128xi32> to vector<1x128xi32>
    %39 = vector.broadcast %38 : vector<1x128xi32> to vector<8x128xi32>
    %40 = arith.cmpi eq, %0, %39 : vector<8x128xi32>
    %41 = arith.extui %40 : vector<8x128xi1> to vector<8x128xi32>
    %42 = arith.sitofp %41 : vector<8x128xi32> to vector<8x128xf32>
    %c0_14 = arith.constant 0 : index
    %c7 = arith.constant 7 : index
    %c0_15 = arith.constant 0 : index
    %43 = vector.load %arg2[%c0_14, %c7, %c0_15] : memref<1x9x128xi32, #tpu.memory_space<vmem>>, vector<1x1x128xi32>
    %44 = vector.shape_cast %43 : vector<1x1x128xi32> to vector<1x128xi32>
    %45 = vector.broadcast %44 : vector<1x128xi32> to vector<8x128xi32>
    %46 = arith.cmpi eq, %0, %45 : vector<8x128xi32>
    %47 = arith.extui %46 : vector<8x128xi1> to vector<8x128xi32>
    %48 = arith.sitofp %47 : vector<8x128xi32> to vector<8x128xf32>
    %c0_16 = arith.constant 0 : index
    %c8 = arith.constant 8 : index
    %c0_17 = arith.constant 0 : index
    %49 = vector.load %arg2[%c0_16, %c8, %c0_17] : memref<1x9x128xi32, #tpu.memory_space<vmem>>, vector<1x1x128xi32>
    %50 = vector.shape_cast %49 : vector<1x1x128xi32> to vector<1x128xi32>
    %51 = vector.broadcast %50 : vector<1x128xi32> to vector<8x128xi32>
    %52 = arith.cmpi eq, %0, %51 : vector<8x128xi32>
    %53 = arith.extui %52 : vector<8x128xi1> to vector<8x128xi32>
    %54 = arith.sitofp %53 : vector<8x128xi32> to vector<8x128xf32>
    %55 = tpu.concatenate %6, %12, %18, %24, %30, %36, %42, %48, %54 in 0 : vector<8x128xf32>, vector<8x128xf32>, vector<8x128xf32>, vector<8x128xf32>, vector<8x128xf32>, vector<8x128xf32>, vector<8x128xf32>, vector<8x128xf32>, vector<8x128xf32> -> vector<72x128xf32>
    %c0_18 = arith.constant 0 : index
    %c0_19 = arith.constant 0 : index
    %56 = vector.load %arg3[%c0_18, %c0_19] : memref<64x72xf32, #tpu.memory_space<vmem>>, vector<64x72xf32>
    %cst = arith.constant dense<0.000000e+00> : vector<64x128xf32>
    %57 = tpu.matmul %56, %55, %cst {dimension_numbers = #tpu.dot_dimension_numbers<[1], [0], [0], [1], [0, 0, 1, 1], [], []>} : vector<64x72xf32>, vector<72x128xf32>, vector<64x128xf32> -> vector<64x128xf32>
    %c0_20 = arith.constant 0 : index
    %c0_21 = arith.constant 0 : index
    %c0_22 = arith.constant 0 : index
    %58 = vector.load %arg4[%c0_20, %c0_21, %c0_22] : memref<1x64x128xf32, #tpu.memory_space<vmem>>, vector<1x64x128xf32>
    %59 = vector.shape_cast %58 : vector<1x64x128xf32> to vector<64x128xf32>
    %60 = vector.shape_cast %57 : vector<64x128xf32> to vector<1x64x128xf32>
    tpu.vector_store %arg4[%c0_20, %c0_21, %c0_22], %60 {strides = array<i32>} : memref<1x64x128xf32, #tpu.memory_space<vmem>>, vector<1x64x128xf32>,
    return
  }
  func.func @transform_0(%arg0: i32, %arg1: i32) -> (i32, i32, i32) {
    %c0_i32 = arith.constant 0 : i32
    %c0_i32_0 = arith.constant 0 : i32
    return %arg0, %c0_i32, %arg1 : i32, i32, i32
  }
  func.func @transform_1(%arg0: i32, %arg1: i32) -> (i32, i32) {
    %c0_i32 = arith.constant 0 : i32
    %c0_i32_0 = arith.constant 0 : i32
    %c0_i32_1 = arith.constant 0 : i32
    return %c0_i32, %c0_i32_0 : i32, i32
  }
  func.func @transform_2(%arg0: i32, %arg1: i32) -> (i32, i32, i32) {
    %c0_i32 = arith.constant 0 : i32
    %c0_i32_0 = arith.constant 0 : i32
    return %arg0, %c0_i32, %arg1 : i32, i32, i32
  }
}

</mosaic_0001>

<llo_original>
// kernel: tpu_custom_call.1
$region0: #{tpu_custom_call.1}
  #allocation0 [shape = 'u32[]', space=smem, size = 0x4, offset = 0x4, fixed_abs, tag = 'smem constant byte address 0x4 - core index']
  #allocation1 [shape = 'u32[72,128]{1,0:T(1,128)}', space=vmem, size = 0x9000, scoped, tag = 'internal scratch']
  %s0 = inlined_call_operand.vmem [shape: s32[2,9,128], index: 0, kind: input, shape index: {}]
  %s1 = inlined_call_operand.hbm [shape: f32[64,72], index: 1, kind: input, shape index: {}]
  %s2 = inlined_call_operand.hbm [shape: f32[2,64,128], index: 2, kind: output, shape index: {}]
  %s3 = sld [smem:[#allocation0]]
  $region45: #{tpu_custom_call.1} parent=0
    _
  %s5 = ssub.s32 1, %s3
  %s6 = scalar_select 0, %s5, %s3
  $region1: #{tpu_custom_call.1} parent=0
    #allocation2 [shape = 'u8[32768]{0}', space=vmem, size = 0x8000, scoped, tag = 'input window, operand 1, single buffered']
    #allocation3 [shape = 's32[2]{0}', space=sflag, size = 0x8, scoped, tag = 'scoped memory for tpu_custom_call.1']
    #allocation4 [shape = 's32[2]{0}', space=sflag, size = 0x8, scoped, tag = 'scoped memory for tpu_custom_call.1']
    #allocation5 [shape = 'u8[65536]{0}', space=vmem, size = 0x10000, scoped, tag = 'output window, operand 0']
    %7 = vsyncpa [#allocation3], 0
    %8 = vsyncpa [#allocation4], 0
    %s9 = scalar_lea.sflag [#allocation4], 1
    %10 = vsyncpa %s9, 0
    loop: start=0, step=1, limit=4
    $region2: #{tpu_custom_call.1} parent=1 // loop_pre_header
      _
    $region3: #{tpu_custom_call.1} parent=1 // loop_header
      %s12 = sphi 0, %s16
      %p13 = scmp.ge.s32.totalorder %s12, 4
      %s19 = sphi 0, %s31
      %s20 = sphi 0, %s27
      %s21 = sphi 0, %s19
      %s22 = sphi 0, %s20
      %s23 = sphi 0, %s21
      %s24 = sphi 0, %s22
      %s36 = sphi 0, %s38
      %s39 = sphi 0, %s36
      %s40 = sphi 0, %s39
      %s56 = sphi 0, %s40
      %s60 = sphi 0, %s60
      %s62 = sphi 0, %s60
      %s63 = sphi 0, %s62
      %s77 = sphi 0, %s63
      %s85 = sphi 0, %s87
      %s88 = sphi 0, %s85
      %s89 = sphi 0, %s88
      %s105 = sphi 0, %s89
    $region4: #{tpu_custom_call.1} parent=1 // loop_header_branch
      %15 = sbr.rel (%p13) target = $region8
    $region5: #{tpu_custom_call.1} parent=1 // loop_body
      %s17 = ssub.s32 %s12, 1
      %s18 = ssub.s32 %s12, 2
      %s25 = sadd.s32 1, %s20
      %p26 = scmp.ge.s32.totalorder %s25, 1
      %s27 = scalar_select %p26, 0, %s25
      %s28 = sadd.s32 1, %s19
      %s29 = scalar_select %p26, %s28, %s19
      %p30 = scmp.ge.s32.totalorder %s29, 2
      %s31 = scalar_select %p30, 0, %s29
      %s32 = ssub.s32 %s19, %s31
      %s33 = ssub.s32 %s20, %s27
      %s34 = sor.u32 %s32, %s33
      %p35 = scmp.eq.s32.totalorder %s34, 0
      %s37 = sadd.s32 %s36, 1
      %s38 = scalar_select %p35, %s36, %s37
      %p41 = pneg %p35
      %p42 = scmp.eq.s32.totalorder %s12, 1
      %p43 = por %p41, %p42
      %p44 = scmp.ne.s32.totalorder %s36, %s39
      %p45 = scmp.eq.s32.totalorder %s12, 0
      %p46 = por %p44, %p45
      %p47 = scmp.ne.s32.totalorder %s36, %s39
      %p48 = scmp.eq.s32.totalorder %s17, 1
      %p49 = por %p47, %p48
      %p50 = scmp.ne.s32.totalorder %s39, %s40
      %p51 = scmp.eq.s32.totalorder %s17, 0
      %p52 = por %p50, %p51
      %p53 = scmp.ne.s32.totalorder %s39, %s40
      %p54 = scmp.eq.s32.totalorder %s18, 1
      %p55 = por %p53, %p54
      %p57 = scmp.ne.s32.totalorder %s40, %s56
      %p58 = scmp.eq.s32.totalorder %s18, 0
      %p59 = por %p57, %p58
      %s61 = sadd.s32 %s60, 1
      %p64 = scmp.eq.s32.totalorder %s12, 1
      %p65 = scmp.ne.s32.totalorder %s60, %s62
      %p66 = scmp.eq.s32.totalorder %s12, 0
      %p67 = por %p65, %p66
      %p68 = scmp.ne.s32.totalorder %s60, %s62
      %p69 = scmp.eq.s32.totalorder %s17, 1
      %p70 = por %p68, %p69
      %p71 = scmp.ne.s32.totalorder %s62, %s63
      %p72 = scmp.eq.s32.totalorder %s17, 0
      %p73 = por %p71, %p72
      %p74 = scmp.ne.s32.totalorder %s62, %s63
      %p75 = scmp.eq.s32.totalorder %s18, 1
      %p76 = por %p74, %p75
      %p78 = scmp.ne.s32.totalorder %s63, %s77
      %p79 = scmp.eq.s32.totalorder %s18, 0
      %p80 = por %p78, %p79
      %s81 = ssub.s32 %s19, %s31
      %s82 = ssub.s32 %s20, %s27
      %s83 = sor.u32 %s81, %s82
      %p84 = scmp.eq.s32.totalorder %s83, 0
      %s86 = sadd.s32 %s85, 1
      %s87 = scalar_select %p84, %s85, %s86
      %p90 = pneg %p84
      %p91 = scmp.eq.s32.totalorder %s12, 1
      %p92 = por %p90, %p91
      %p93 = scmp.ne.s32.totalorder %s85, %s88
      %p94 = scmp.eq.s32.totalorder %s12, 0
      %p95 = por %p93, %p94
      %p96 = scmp.ne.s32.totalorder %s85, %s88
      %p97 = scmp.eq.s32.totalorder %s17, 1
      %p98 = por %p96, %p97
      %p99 = scmp.ne.s32.totalorder %s88, %s89
      %p100 = scmp.eq.s32.totalorder %s17, 0
      %p101 = por %p99, %p100
      %p102 = scmp.ne.s32.totalorder %s88, %s89
      %p103 = scmp.eq.s32.totalorder %s18, 1
      %p104 = por %p102, %p103
      %p106 = scmp.ne.s32.totalorder %s89, %s105
      %p107 = scmp.eq.s32.totalorder %s18, 0
      %p108 = por %p106, %p107
      %p109 = scmp.le.s32.totalorder 1, %s12
      %p110 = scmp.lt.s32.totalorder %s12, 3
      %p111 = pnand %p109, %p110
      %p112 = pneg %p111
      // Predicated region
      $region9: #{tpu_custom_call.1} parent=5 // pred_check
        _
      $region10: #{tpu_custom_call.1} parent=5 // pred_check_branch
        %114 = sbr.rel (%p111) target = $region12
      $region11: #{tpu_custom_call.1} parent=5 // pred_region
        %s115 = ssub.s32 %s12, 1
        // Predicated region
        $region13: #{tpu_custom_call.1} parent=11 // pred_check
          %p116 = pneg %p73
        $region14: #{tpu_custom_call.1} parent=11 // pred_check_branch
          %118 = sbr.rel (%p116) target = $region16
        $region15: #{tpu_custom_call.1} parent=11 // pred_region
          %120 = vsyncadd [#allocation3], 0
          %s121 = sshll.u32 %s1, 4
          %s122 = int_to_ptr.hbm [resolvable:$true] %s121
          %s123 = sshll.u32 [#allocation2], 4
          %s124 = int_to_ptr.vmem [resolvable:$true] %s123
          %129 = dma.hbm_to_vmem [thread:$0]  %s122, 1024, %s124, [#allocation3], 128, 128, 8
        $region16: #{tpu_custom_call.1} parent=11 // pred_fallthru
          _
      $region12: #{tpu_custom_call.1} parent=5 // pred_fallthru
        _
      %p130 = scmp.lt.s32.totalorder %s12, 2
      // Predicated region
      $region17: #{tpu_custom_call.1} parent=5 // pred_check
        %p131 = pneg %p130
      $region18: #{tpu_custom_call.1} parent=5 // pred_check_branch
        %133 = sbr.rel (%p131) target = $region20
      $region19: #{tpu_custom_call.1} parent=5 // pred_region
        // Predicated region
        $region21: #{tpu_custom_call.1} parent=19 // pred_check
          %p134 = pneg %p46
        $region22: #{tpu_custom_call.1} parent=19 // pred_check_branch
          %136 = sbr.rel (%p134) target = $region24
        $region23: #{tpu_custom_call.1} parent=19 // pred_region
          %p137 = scmp.lt.s32.totalorder %s19, 1
          %s138 = scalar_select %p137, %s19, 1
          %p139 = scmp.lt.s32.totalorder %s20, 0
          %s140 = scalar_select %p139, %s20, 0
          %s141 = smul.addr %s138, 2
          %s142 = sadd.s32 %s140, %s141
          %s143 = smul.addr %s142, 8
          %s144 = scalar_lea.vmem %s0, %s143
        $region24: #{tpu_custom_call.1} parent=19 // pred_fallthru
          _
      $region20: #{tpu_custom_call.1} parent=5 // pred_fallthru
        _
      %p145 = scmp.le.s32.totalorder 1, %s12
      %p146 = scmp.lt.s32.totalorder %s12, 3
      %p147 = pnand %p145, %p146
      %p148 = pneg %p147
      // Predicated region
      $region25: #{tpu_custom_call.1} parent=5 // pred_check
        _
      $region26: #{tpu_custom_call.1} parent=5 // pred_check_branch
        %150 = sbr.rel (%p147) target = $region28
      $region27: #{tpu_custom_call.1} parent=5 // pred_region
        %s151 = ssub.s32 %s12, 1
        // Predicated region
        $region29: #{tpu_custom_call.1} parent=27 // pred_check
          %p152 = pneg %p73
        $region30: #{tpu_custom_call.1} parent=27 // pred_check_branch
          %154 = sbr.rel (%p152) target = $region32
        $region31: #{tpu_custom_call.1} parent=27 // pred_region
          %156 = dma.done [#allocation3], 1024
        $region32: #{tpu_custom_call.1} parent=27 // pred_fallthru
          _
        %p157 = scmp.lt.s32.totalorder %s21, 1
        %s158 = scalar_select %p157, %s21, 1
        %p159 = scmp.lt.s32.totalorder %s22, 0
        %s160 = scalar_select %p159, %s22, 0
        %s161 = smul.addr %s158, 2
        %s162 = sadd.s32 %s160, %s161
        %s163 = smul.addr %s162, 8
        %s164 = scalar_lea.vmem %s0, %s163
        %p165 = pneg %p52
        %p166 = pneg %p49
        %p167 = pneg %p73
        %p168 = pneg %p70
        %p169 = pneg %p101
        %p170 = pneg %p98
        %s171 = sand.u32 %s88, 1
        %s172 = scalar_lea.sflag [#allocation4], %s171
        %s173 = sand.u32 %s88, 1
        %s174 = smul.addr %s173, 64
        %s175 = scalar_lea.vmem [#allocation5], %s174
        %p176 = scmp.lt.s32.totalorder %s21, 1
        %s177 = scalar_select %p176, %s21, 1
        %p178 = scmp.lt.s32.totalorder %s22, 0
        %s179 = scalar_select %p178, %s22, 0
        %s180 = smul.addr %s177, 2
        %s181 = sadd.s32 %s179, %s180
        %s182 = smul.addr %s181, 8
        %s183 = scalar_lea.vmem %s0, %s182
        %v184 = vlaneseq
        %v185 = vshrl.u32 %v184, 7
        %v186 = vld [vmem:[%s183] sm:$0x1]
        %v187 = vperm.slane %v186, 0
        %vm188 = vcmp.eq.s32.totalorder %v185, %v187
        %v189 = vsel %vm188, 1, 0
        %v190 = vcvt.s32.f32 %v189
        %v191 = vld [vmem:[%s183 + $0x1] sm:$0x1]
        %v192 = vperm.slane %v191, 0
        %vm193 = vcmp.eq.s32.totalorder %v185, %v192
        %v194 = vsel %vm193, 1, 0
        %v195 = vcvt.s32.f32 %v194
        %v196 = vld [vmem:[%s183 + $0x2] sm:$0x1]
        %v197 = vperm.slane %v196, 0
        %vm198 = vcmp.eq.s32.totalorder %v185, %v197
        %v199 = vsel %vm198, 1, 0
        %v200 = vcvt.s32.f32 %v199
        %v201 = vld [vmem:[%s183 + $0x3] sm:$0x1]
        %v202 = vperm.slane %v201, 0
        %vm203 = vcmp.eq.s32.totalorder %v185, %v202
        %v204 = vsel %vm203, 1, 0
        %v205 = vcvt.s32.f32 %v204
        %v206 = vld [vmem:[%s183 + $0x4] sm:$0x1]
        %v207 = vperm.slane %v206, 0
        %vm208 = vcmp.eq.s32.totalorder %v185, %v207
        %v209 = vsel %vm208, 1, 0
        %v210 = vcvt.s32.f32 %v209
        %v211 = vld [vmem:[%s183 + $0x5] sm:$0x1]
        %v212 = vperm.slane %v211, 0
        %vm213 = vcmp.eq.s32.totalorder %v185, %v212
        %v214 = vsel %vm213, 1, 0
        %v215 = vcvt.s32.f32 %v214
        %v216 = vld [vmem:[%s183 + $0x6] sm:$0x1]
        %v217 = vperm.slane %v216, 0
        %vm218 = vcmp.eq.s32.totalorder %v185, %v217
        %v219 = vsel %vm218, 1, 0
        %v220 = vcvt.s32.f32 %v219
        %v221 = vld [vmem:[%s183 + $0x7] sm:$0x1]
        %v222 = vperm.slane %v221, 0
        %vm223 = vcmp.eq.s32.totalorder %v185, %v222
        %v224 = vsel %vm223, 1, 0
        %v225 = vcvt.s32.f32 %v224
        %v226 = vld [vmem:[%s183 + $0x8] sm:$0x1]
        %v227 = vperm.slane %v226, 0
        %vm228 = vcmp.eq.s32.totalorder %v185, %v227
        %v229 = vsel %vm228, 1, 0
        %v230 = vcvt.s32.f32 %v229
        %v231 = vld [vmem:[#allocation2] sm:$0xff]
        %v232 = vld [vmem:[#allocation2 + $0x8] sm:$0xff]
        %v233 = vld [vmem:[#allocation2 + $0x10] sm:$0xff]
        %v234 = vld [vmem:[#allocation2 + $0x18] sm:$0xff]
        %v235 = vld [vmem:[#allocation2 + $0x20] sm:$0xff]
        %v236 = vld [vmem:[#allocation2 + $0x28] sm:$0xff]
        %v237 = vld [vmem:[#allocation2 + $0x30] sm:$0xff]
        %v238 = vld [vmem:[#allocation2 + $0x38] sm:$0xff]
        %vm239 = vcmask 588800
        %v241 = vsel %vm239, %v231, 0
        %v244 = vsel %vm239, %v232, 0
        %v247 = vsel %vm239, %v233, 0
        %v250 = vsel %vm239, %v234, 0
        %v253 = vsel %vm239, %v235, 0
        %v256 = vsel %vm239, %v236, 0
        %v259 = vsel %vm239, %v237, 0
        %v262 = vsel %vm239, %v238, 0
        %264 = vmatpush.msra.mxu0 0.0
        %265 = vmatpush.msra.mxu0 0.0
        %266 = vmatpush.msra.mxu0 0.0
        %267 = vmatpush.msra.mxu0 0.0
        %268 = vmatpush.msra.mxu0 0.0
        %269 = vmatpush.msra.mxu0 0.0
        %270 = vmatpush.msra.mxu0 0.0
        %271 = vmatpush.msra.mxu0 %v230
        %272 = vmatpush.msra.mxu0 %v225
        %273 = vmatpush.msra.mxu0 %v220
        %274 = vmatpush.msra.mxu0 %v215
        %275 = vmatpush.msra.mxu0 %v210
        %276 = vmatpush.msra.mxu0 %v205
        %277 = vmatpush.msra.mxu0 %v200
        %278 = vmatpush.msra.mxu0 %v195
        %279 = vmatpush.msra.mxu0 %v190
        %280 = vmatmul.f32.gmra.mxu0 %v241
        %v281 = vpop.f32.mrf.mxu0
        %v282 = vadd.f32 0.0, %v281
        %283 = vmatmul.f32.gmra.mxu0 %v244
        %v284 = vpop.f32.mrf.mxu0
        %v285 = vadd.f32 0.0, %v284
        %286 = vmatmul.f32.gmra.mxu0 %v247
        %v287 = vpop.f32.mrf.mxu0
        %v288 = vadd.f32 0.0, %v287
        %289 = vmatmul.f32.gmra.mxu0 %v250
        %v290 = vpop.f32.mrf.mxu0
        %v291 = vadd.f32 0.0, %v290
        %292 = vmatmul.f32.gmra.mxu0 %v253
        %v293 = vpop.f32.mrf.mxu0
        %v294 = vadd.f32 0.0, %v293
        %295 = vmatmul.f32.gmra.mxu0 %v256
        %v296 = vpop.f32.mrf.mxu0
        %v297 = vadd.f32 0.0, %v296
        %298 = vmatmul.f32.gmra.mxu0 %v259
        %v299 = vpop.f32.mrf.mxu0
        %v300 = vadd.f32 0.0, %v299
        %301 = vmatmul.f32.gmra.mxu0 %v262
        %v302 = vpop.f32.mrf.mxu0
        %v303 = vadd.f32 0.0, %v302
        %304 = vdwg.mxu0
        %305 = vst [vmem:[%s175] sm:$0xff] %v282
        %306 = vst [vmem:[%s175 + $0x8] sm:$0xff] %v285
        %307 = vst [vmem:[%s175 + $0x10] sm:$0xff] %v288
        %308 = vst [vmem:[%s175 + $0x18] sm:$0xff] %v291
        %309 = vst [vmem:[%s175 + $0x20] sm:$0xff] %v294
        %310 = vst [vmem:[%s175 + $0x28] sm:$0xff] %v297
        %311 = vst [vmem:[%s175 + $0x30] sm:$0xff] %v300
        %312 = vst [vmem:[%s175 + $0x38] sm:$0xff] %v303
        %s313 = sand.u32 %s88, 1
        %s314 = scalar_lea.sflag [#allocation4], %s313
        %s315 = sand.u32 %s88, 1
        %s316 = smul.addr %s315, 64
        %s317 = scalar_lea.vmem [#allocation5], %s316
        // Predicated region
        $region33: #{tpu_custom_call.1} parent=27 // pred_check
          %p318 = pneg %p98
        $region34: #{tpu_custom_call.1} parent=27 // pred_check_branch
          %320 = sbr.rel (%p318) target = $region36
        $region35: #{tpu_custom_call.1} parent=27 // pred_region
          %322 = vsyncadd %s314, 0
          %s323 = smul.addr %s21, 8
          %s324 = sadd.s32 %s22, %s323
          %s325 = smul.addr %s324, 8
          %s326 = scalar_lea.hbm %s2, %s325
          %s327 = sshll.u32 %s317, 4
          %s328 = int_to_ptr.vmem [resolvable:$true] %s327
          %s329 = sshll.u32 %s326, 4
          %s330 = int_to_ptr.hbm [resolvable:$true] %s329
          %335 = dma.vmem_to_hbm [thread:$0]  %s328, 1024, %s330, %s314, 128, 128, 8
        $region36: #{tpu_custom_call.1} parent=27 // pred_fallthru
          _
      $region28: #{tpu_custom_call.1} parent=5 // pred_fallthru
        _
      %p336 = scmp.le.s32.totalorder 2, %s12
      // Predicated region
      $region37: #{tpu_custom_call.1} parent=5 // pred_check
        %p337 = pneg %p336
      $region38: #{tpu_custom_call.1} parent=5 // pred_check_branch
        %339 = sbr.rel (%p337) target = $region40
      $region39: #{tpu_custom_call.1} parent=5 // pred_region
        %s340 = ssub.s32 %s12, 2
        // Predicated region
        $region41: #{tpu_custom_call.1} parent=39 // pred_check
          %p341 = pneg %p104
        $region42: #{tpu_custom_call.1} parent=39 // pred_check_branch
          %343 = sbr.rel (%p341) target = $region44
        $region43: #{tpu_custom_call.1} parent=39 // pred_region
          %s344 = sand.u32 %s89, 1
          %s345 = scalar_lea.sflag [#allocation4], %s344
          %s346 = sand.u32 %s89, 1
          %s347 = smul.addr %s346, 64
          %s348 = scalar_lea.vmem [#allocation5], %s347
          %350 = dma.done %s345, 1024
        $region44: #{tpu_custom_call.1} parent=39 // pred_fallthru
          _
      $region40: #{tpu_custom_call.1} parent=5 // pred_fallthru
        _
    $region6: #{tpu_custom_call.1} parent=1 // loop_footer
      %s16 = sadd.s32 1, %s12
    $region7: #{tpu_custom_call.1} parent=1 // loop_footer_branch
      %11 = sbr.rel target = $region3
    $region8: #{tpu_custom_call.1} parent=1 // loop_exit
      _
    %351 = vsyncpa [#allocation3], 1
    %s352 = scalar_lea.sflag [#allocation3], 1
    %353 = vsyncpa %s352, 1
    %354 = vsyncpa [#allocation4], 1
    %s355 = scalar_lea.sflag [#allocation4], 1
    %356 = vsyncpa %s355, 1

</llo_original>
